<compile_context>
chip_gen: v5e
topology: v5e:2x2
jax: 0.10.0
libtpu: 0.0.40
codegen_flags: <defaults>
</compile_context>

<pallas_src>
import jax
import jax.numpy as jnp
from jax import lax
from jax.experimental import pallas as pl
from jax.experimental.pallas import tpu as pltpu

NEG_SLOPE = 0.01        # F.leaky_relu default negative_slope
_CHUNK = 512            # lanes (batch columns) processed per inner-loop step

# Row layout of the packed parameter slab (all starts are multiples of 8).
_R12, _R3, _R4, _R5 = 0, 40, 72, 80    # w12:(40,4) w3:(30,40) w4:(8,30) w5:(1,8)
_SLAB_ROWS = 88
_SLAB_COLS = 128


def _leaky_relu(x):
    return jnp.where(x > 0, x, NEG_SLOPE * x)


def critic_kernel(x_ref, slab_ref, o_ref):
    # x_ref: (4, TB) feature-major input tile (batch on the 128-lane axis).
    # slab_ref: (88, 128) packed weights/biases (constant across grid steps).
    # o_ref: (1, TB) lane-dense output tile.

    # Load the small parameter blocks once per grid step (static slices).
    w12 = slab_ref[_R12:_R12 + 40, 0:4]        # (40, 4)   fc2 @ fc1 folded
    b12 = slab_ref[_R12:_R12 + 40, 4:5]        # (40, 1)
    w3  = slab_ref[_R3:_R3 + 30, 0:40]         # (30, 40)
    b3  = slab_ref[_R3:_R3 + 30, 40:41]        # (30, 1)
    w4  = slab_ref[_R4:_R4 + 8, 0:30]          # (8, 30)
    b4  = slab_ref[_R4:_R4 + 8, 30:31]         # (8, 1)
    w5  = slab_ref[_R5:_R5 + 1, 0:8]           # (1, 8)
    b5  = slab_ref[_R5:_R5 + 1, 8:9]           # (1, 1)

    num_chunks = x_ref.shape[1] // _CHUNK      # static

    def chunk_body(c, carry):
        off = pl.multiple_of(c * _CHUNK, _CHUNK)
        xc = x_ref[:, pl.ds(off, _CHUNK)]                                   # (4, C)

        # fc1 folded into fc2 (no activation after fc1 in the reference).
        h = jnp.dot(w12, xc, preferred_element_type=jnp.float32) + b12      # (40, C)
        h = _leaky_relu(h)
        h = jnp.dot(w3, h, preferred_element_type=jnp.float32) + b3         # (30, C)
        h = _leaky_relu(h)
        h = jnp.dot(w4, h, preferred_element_type=jnp.float32) + b4         # (8, C)
        h = _leaky_relu(h)
        h = jnp.dot(w5, h, preferred_element_type=jnp.float32) + b5         # (1, C)

        o_ref[:, pl.ds(off, _CHUNK)] = h.astype(o_ref.dtype)                # lane-dense store
        return carry

    lax.fori_loop(0, num_chunks, chunk_body, None, unroll=True)


def _round_up(a, m):
    return ((a + m - 1) // m) * m


def _choose_tile(batch, desired):
    """Largest tile <= desired (multiple of _CHUNK) that still yields >= 2 grid
    steps when the batch allows it, so both v7x TensorCores get work."""
    desired = max(_round_up(desired, _CHUNK), _CHUNK)
    two_step = _round_up(pl.cdiv(batch, 2), _CHUNK)
    return max(min(desired, two_step), _CHUNK)


def _pack_params(params):
    """Fold fc1 into fc2 and pack all weights/biases into one (88,128) slab."""
    (w1, b1), (w2, b2), (w3, b3), (w4, b4), (w5, b5) = params
    w12 = w2 @ w1                    # (40, 4) exact: no activation after fc1
    b12 = w2 @ b1 + b2               # (40,)

    slab = jnp.zeros((_SLAB_ROWS, _SLAB_COLS), jnp.float32)
    slab = slab.at[_R12:_R12 + 40, 0:4].set(w12)
    slab = slab.at[_R12:_R12 + 40, 4:5].set(b12[:, None])
    slab = slab.at[_R3:_R3 + 30, 0:40].set(w3)
    slab = slab.at[_R3:_R3 + 30, 40:41].set(b3[:, None])
    slab = slab.at[_R4:_R4 + 8, 0:30].set(w4)
    slab = slab.at[_R4:_R4 + 8, 30:31].set(b4[:, None])
    slab = slab.at[_R5:_R5 + 1, 0:8].set(w5)
    slab = slab.at[_R5:_R5 + 1, 8:9].set(b5[:, None])
    return slab


def critic_net_forward(x, params, *, batch_tile=8192, feature_major=False):
    """CriticNet forward.

    x: (B, 4) float32 (module-native layout), or (4, B) if feature_major=True
       (zero-copy path: no wrapper-side transpose, kernel streams it directly).
    params: list of (W, b) in PyTorch nn.Linear layout (W: (out,in), b: (out,)).
    Returns (B, 1) float32.
    """
    if feature_major:
        assert x.ndim == 2 and x.shape[0] == 4
        B = x.shape[1]
    else:
        assert x.ndim == 2 and x.shape[1] == 4
        B = x.shape[0]

    tile = _choose_tile(B, batch_tile)
    num_tiles = pl.cdiv(B, tile)
    b_pad = num_tiles * tile

    if feature_major:
        xT = x if b_pad == B else jnp.pad(x, ((0, 0), (0, b_pad - B)))
    else:
        # Single fused transpose+zero-pad producing the feature-major slab.
        xT = jnp.zeros((4, b_pad), x.dtype).at[:, :B].set(x.T)

    slab = _pack_params(params)

    flops = 2 * b_pad * (40 * 4 + 30 * 40 + 8 * 30 + 1 * 8)
    bytes_accessed = b_pad * (4 + 1) * 4 + int(slab.size) * 4   # kernel-side traffic only

    outT = pl.pallas_call(
        critic_kernel,
        out_shape=jax.ShapeDtypeStruct((1, b_pad), jnp.float32),
        grid_spec=pltpu.PrefetchScalarGridSpec(
            num_scalar_prefetch=0,
            grid=(num_tiles,),
            in_specs=[
                pl.BlockSpec((4, tile), lambda i: (0, i)),
                pl.BlockSpec((_SLAB_ROWS, _SLAB_COLS), lambda i: (0, 0)),
            ],
            out_specs=pl.BlockSpec((1, tile), lambda i: (0, i)),
        ),
        compiler_params=pltpu.CompilerParams(
            dimension_semantics=("parallel",)),
        cost_estimate=pl.CostEstimate(
            flops=flops, transcendentals=0, bytes_accessed=bytes_accessed),
    )(xT, slab)

    return outT[0, :B].reshape(B, 1)


def init_params(key):
    """Deterministic synthetic parameters in PyTorch nn.Linear layout."""
    sizes = [(4, 20), (20, 40), (40, 30), (30, 8), (8, 1)]
    params = []
    for fan_in, fan_out in sizes:
        key, kw, kb = jax.random.split(key, 3)
        bound = 1.0 / jnp.sqrt(fan_in)
        w = jax.random.uniform(kw, (fan_out, fan_in), jnp.float32, -bound, bound)
        b = jax.random.uniform(kb, (fan_out,), jnp.float32, -bound, bound)
        params.append((w, b))
    return params


def reference_forward(x, params):
    (w1, b1), (w2, b2), (w3, b3), (w4, b4), (w5, b5) = params
    h = x @ w1.T + b1
    h = jax.nn.leaky_relu(h @ w2.T + b2, NEG_SLOPE)
    h = jax.nn.leaky_relu(h @ w3.T + b3, NEG_SLOPE)
    h = jax.nn.leaky_relu(h @ w4.T + b4, NEG_SLOPE)
    return h @ w5.T + b5


if __name__ == "__main__":
    key = jax.random.PRNGKey(0)
    kx, kp = jax.random.split(key)

    # Non-multiple-of-tile batch: tile is clamped to 512 so the grid has 2
    # parallel steps (both v7x TensorCores used); tail is padded and sliced off.
    B = 600
    x = jax.random.normal(kx, (B, 4), jnp.float32)
    params = init_params(kp)

    out = critic_net_forward(x, params)
    out = jax.block_until_ready(out)

    ref = reference_forward(x, params)
    assert out.shape == (B, 1)
    assert jnp.allclose(out, ref, atol=1e-4, rtol=1e-4), "mismatch vs reference"

    # Zero-copy feature-major path (no wrapper-side transpose/materialization).
    out_fm = jax.block_until_ready(
        critic_net_forward(x.T, params, feature_major=True))
    assert jnp.allclose(out_fm, ref, atol=1e-4, rtol=1e-4), "feature-major mismatch"

    print("KERNEL_OK")
</pallas_src>

<mosaic_0001>
module attributes {stable_mosaic.version = 11 : i64} {
  func.func @critic_kernel(%arg0: i32, %arg1: memref<4x512xf32, #tpu.memory_space<vmem>>, %arg2: memref<88x128xf32, #tpu.memory_space<vmem>>, %arg3: memref<1x512xf32, #tpu.memory_space<vmem>>) attributes {dimension_semantics = [#tpu.dimension_semantics<parallel>], iteration_bounds = array<i64: 2>, scalar_prefetch = 0 : i64, scratch_operands = 0 : i64, tpu.core_type = #tpu.core_type<tc>, window_params = [{transform_indices = @transform_0, window_bounds = array<i64: 4, 512>}, {pipeline_mode = #tpu.pipeline_mode<synchronous>, transform_indices = @transform_1, window_bounds = array<i64: 88, 128>}, {transform_indices = @transform_2, window_bounds = array<i64: 1, 512>}]} {
    %c0 = arith.constant 0 : index
    %c0_0 = arith.constant 0 : index
    %0 = vector.load %arg2[%c0, %c0_0] : memref<88x128xf32, #tpu.memory_space<vmem>>, vector<40x4xf32>
    %c0_1 = arith.constant 0 : index
    %c4 = arith.constant 4 : index
    %1 = vector.load %arg2[%c0_1, %c4] : memref<88x128xf32, #tpu.memory_space<vmem>>, vector<40x1xf32>
    %c40 = arith.constant 40 : index
    %c0_2 = arith.constant 0 : index
    %2 = vector.load %arg2[%c40, %c0_2] : memref<88x128xf32, #tpu.memory_space<vmem>>, vector<30x40xf32>
    %c40_3 = arith.constant 40 : index
    %c40_4 = arith.constant 40 : index
    %3 = vector.load %arg2[%c40_3, %c40_4] : memref<88x128xf32, #tpu.memory_space<vmem>>, vector<30x1xf32>
    %c72 = arith.constant 72 : index
    %c0_5 = arith.constant 0 : index
    %4 = vector.load %arg2[%c72, %c0_5] : memref<88x128xf32, #tpu.memory_space<vmem>>, vector<8x30xf32>
    %c72_6 = arith.constant 72 : index
    %c30 = arith.constant 30 : index
    %5 = vector.load %arg2[%c72_6, %c30] : memref<88x128xf32, #tpu.memory_space<vmem>>, vector<8x1xf32>
    %c80 = arith.constant 80 : index
    %c0_7 = arith.constant 0 : index
    %6 = vector.load %arg2[%c80, %c0_7] : memref<88x128xf32, #tpu.memory_space<vmem>>, vector<1x8xf32>
    %c80_8 = arith.constant 80 : index
    %c8 = arith.constant 8 : index
    %7 = vector.load %arg2[%c80_8, %c8] : memref<88x128xf32, #tpu.memory_space<vmem>>, vector<1x1xf32>
    %c0_i32 = arith.constant 0 : i32
    %c512_i32 = arith.constant 512 : i32
    %8 = arith.muli %c0_i32, %c512_i32 : i32
    %9 = tpu.assume_multiple %8, 512 : i32
    %c0_9 = arith.constant 0 : index
    %10 = arith.index_cast %9 : i32 to index
    %11 = vector.load %arg1[%c0_9, %10] : memref<4x512xf32, #tpu.memory_space<vmem>>, vector<4x512xf32>
    %cst = arith.constant dense<0.000000e+00> : vector<40x512xf32>
    %12 = tpu.matmul %0, %11, %cst {dimension_numbers = #tpu.dot_dimension_numbers<[1], [0], [0], [1], [0, 0, 1, 1], [], []>} : vector<40x4xf32>, vector<4x512xf32>, vector<40x512xf32> -> vector<40x512xf32>
    %13 = vector.broadcast %1 : vector<40x1xf32> to vector<40x512xf32>
    %14 = arith.addf %12, %13 : vector<40x512xf32>
    %cst_10 = arith.constant 0.000000e+00 : f32
    %15 = vector.broadcast %cst_10 : f32 to vector<40x512xf32>
    %16 = arith.cmpf ogt, %14, %15 : vector<40x512xf32>
    %cst_11 = arith.constant 0.00999999977 : f32
    %17 = vector.broadcast %cst_11 : f32 to vector<40x512xf32>
    %18 = arith.mulf %17, %14 : vector<40x512xf32>
    %19 = arith.select %16, %14, %18 : vector<40x512xi1>, vector<40x512xf32>
    %cst_12 = arith.constant dense<0.000000e+00> : vector<30x512xf32>
    %20 = tpu.matmul %2, %19, %cst_12 {dimension_numbers = #tpu.dot_dimension_numbers<[1], [0], [0], [1], [0, 0, 1, 1], [], []>} : vector<30x40xf32>, vector<40x512xf32>, vector<30x512xf32> -> vector<30x512xf32>
    %21 = vector.broadcast %3 : vector<30x1xf32> to vector<30x512xf32>
    %22 = arith.addf %20, %21 : vector<30x512xf32>
    %cst_13 = arith.constant 0.000000e+00 : f32
    %23 = vector.broadcast %cst_13 : f32 to vector<30x512xf32>
    %24 = arith.cmpf ogt, %22, %23 : vector<30x512xf32>
    %cst_14 = arith.constant 0.00999999977 : f32
    %25 = vector.broadcast %cst_14 : f32 to vector<30x512xf32>
    %26 = arith.mulf %25, %22 : vector<30x512xf32>
    %27 = arith.select %24, %22, %26 : vector<30x512xi1>, vector<30x512xf32>
    %cst_15 = arith.constant dense<0.000000e+00> : vector<8x512xf32>
    %28 = tpu.matmul %4, %27, %cst_15 {dimension_numbers = #tpu.dot_dimension_numbers<[1], [0], [0], [1], [0, 0, 1, 1], [], []>} : vector<8x30xf32>, vector<30x512xf32>, vector<8x512xf32> -> vector<8x512xf32>
    %29 = vector.broadcast %5 : vector<8x1xf32> to vector<8x512xf32>
    %30 = arith.addf %28, %29 : vector<8x512xf32>
    %cst_16 = arith.constant 0.000000e+00 : f32
    %31 = vector.broadcast %cst_16 : f32 to vector<8x512xf32>
    %32 = arith.cmpf ogt, %30, %31 : vector<8x512xf32>
    %cst_17 = arith.constant 0.00999999977 : f32
    %33 = vector.broadcast %cst_17 : f32 to vector<8x512xf32>
    %34 = arith.mulf %33, %30 : vector<8x512xf32>
    %35 = arith.select %32, %30, %34 : vector<8x512xi1>, vector<8x512xf32>
    %cst_18 = arith.constant dense<0.000000e+00> : vector<1x512xf32>
    %36 = tpu.matmul %6, %35, %cst_18 {dimension_numbers = #tpu.dot_dimension_numbers<[1], [0], [0], [1], [0, 0, 1, 1], [], []>} : vector<1x8xf32>, vector<8x512xf32>, vector<1x512xf32> -> vector<1x512xf32>
    %37 = vector.broadcast %7 : vector<1x1xf32> to vector<1x512xf32>
    %38 = arith.addf %36, %37 : vector<1x512xf32>
    %c0_19 = arith.constant 0 : index
    %39 = arith.index_cast %9 : i32 to index
    %40 = vector.load %arg3[%c0_19, %39] : memref<1x512xf32, #tpu.memory_space<vmem>>, vector<1x512xf32>
    tpu.vector_store %arg3[%c0_19, %39], %38 {strides = array<i32>} : memref<1x512xf32, #tpu.memory_space<vmem>>, vector<1x512xf32>,
    %c1_i32 = arith.constant 1 : i32
    return
  }
  func.func @transform_0(%arg0: i32) -> (i32, i32) {
    %c0_i32 = arith.constant 0 : i32
    %c0_i32_0 = arith.constant 0 : i32
    return %c0_i32, %arg0 : i32, i32
  }
  func.func @transform_1(%arg0: i32) -> (i32, i32) {
    %c0_i32 = arith.constant 0 : i32
    %c0_i32_0 = arith.constant 0 : i32
    %c0_i32_1 = arith.constant 0 : i32
    return %c0_i32, %c0_i32_0 : i32, i32
  }
  func.func @transform_2(%arg0: i32) -> (i32, i32) {
    %c0_i32 = arith.constant 0 : i32
    %c0_i32_0 = arith.constant 0 : i32
    return %c0_i32, %arg0 : i32, i32
  }
}

</mosaic_0001>

<llo_original>
// kernel: tpu_custom_call.1
$region0: #{tpu_custom_call.1}
  #allocation0 [shape = 'u32[]', space=smem, size = 0x4, offset = 0x4, fixed_abs, tag = 'smem constant byte address 0x4 - core index']
  #allocation1 [shape = 'u32[72,128]{1,0:T(1,128)}', space=vmem, size = 0x9000, scoped, tag = 'internal scratch']
  %s0 = inlined_call_operand.hbm [shape: f32[4,1024], index: 0, kind: input, shape index: {}]
  %s1 = inlined_call_operand.hbm [shape: f32[88,128], index: 1, kind: input, shape index: {}]
  %s2 = inlined_call_operand.hbm [shape: f32[1,1024], index: 2, kind: output, shape index: {}]
  %s3 = sld [smem:[#allocation0]]
  $region49: #{tpu_custom_call.1} parent=0
    _
  %s5 = ssub.s32 1, %s3
  %s6 = scalar_select 0, %s5, %s3
  $region1: #{tpu_custom_call.1} parent=0
    #allocation2 [shape = 'u8[16384]{0}', space=vmem, size = 0x4000, scoped, tag = 'input window, operand 0']
    #allocation3 [shape = 's32[2]{0}', space=sflag, size = 0x8, scoped, tag = 'scoped memory for tpu_custom_call.1']
    #allocation4 [shape = 's32[2]{0}', space=sflag, size = 0x8, scoped, tag = 'scoped memory for tpu_custom_call.1']
    #allocation5 [shape = 'u8[45056]{0}', space=vmem, size = 0xb000, scoped, tag = 'input window, operand 1, single buffered']
    #allocation6 [shape = 's32[1]{0}', space=sflag, size = 0x4, scoped, tag = 'scoped memory for tpu_custom_call.1']
    #allocation7 [shape = 'u8[4096]{0}', space=vmem, size = 0x1000, scoped, tag = 'output window, operand 0']
    %7 = vsyncpa [#allocation3], 0
    %s8 = scalar_lea.sflag [#allocation3], 1
    %9 = vsyncpa %s8, 0
    %10 = vsyncpa [#allocation6], 0
    %11 = vsyncpa [#allocation4], 0
    %s12 = scalar_lea.sflag [#allocation4], 1
    %13 = vsyncpa %s12, 0
    loop: start=0, step=1, limit=4
    $region2: #{tpu_custom_call.1} parent=1 // loop_pre_header
      _
    $region3: #{tpu_custom_call.1} parent=1 // loop_header
      %s15 = sphi 0, %s19
      %p16 = scmp.ge.s32.totalorder %s15, 4
      %s25 = sphi 0, %s27
      %s28 = sphi 0, %s25
      %s29 = sphi 0, %s28
      %s45 = sphi 0, %s29
      %s49 = sphi 0, %s49
      %s51 = sphi 0, %s49
      %s52 = sphi 0, %s51
      %s66 = sphi 0, %s52
      %s72 = sphi 0, %s74
      %s75 = sphi 0, %s72
      %s76 = sphi 0, %s75
      %s92 = sphi 0, %s76
    $region4: #{tpu_custom_call.1} parent=1 // loop_header_branch
      %18 = sbr.rel (%p16) target = $region8
    $region5: #{tpu_custom_call.1} parent=1 // loop_body
      %s20 = ssub.s32 %s15, 1
      %s21 = ssub.s32 %s15, 2
      %s22 = sadd.s32 %s15, 1
      %s23 = ssub.s32 %s15, %s22
      %p24 = scmp.eq.s32.totalorder %s23, 0
      %s26 = sadd.s32 %s25, 1
      %s27 = scalar_select %p24, %s25, %s26
      %p30 = pneg %p24
      %p31 = scmp.eq.s32.totalorder %s15, 1
      %p32 = por %p30, %p31
      %p33 = scmp.ne.s32.totalorder %s25, %s28
      %p34 = scmp.eq.s32.totalorder %s15, 0
      %p35 = por %p33, %p34
      %p36 = scmp.ne.s32.totalorder %s25, %s28
      %p37 = scmp.eq.s32.totalorder %s20, 1
      %p38 = por %p36, %p37
      %p39 = scmp.ne.s32.totalorder %s28, %s29
      %p40 = scmp.eq.s32.totalorder %s20, 0
      %p41 = por %p39, %p40
      %p42 = scmp.ne.s32.totalorder %s28, %s29
      %p43 = scmp.eq.s32.totalorder %s21, 1
      %p44 = por %p42, %p43
      %p46 = scmp.ne.s32.totalorder %s29, %s45
      %p47 = scmp.eq.s32.totalorder %s21, 0
      %p48 = por %p46, %p47
      %s50 = sadd.s32 %s49, 1
      %p53 = scmp.eq.s32.totalorder %s15, 1
      %p54 = scmp.ne.s32.totalorder %s49, %s51
      %p55 = scmp.eq.s32.totalorder %s15, 0
      %p56 = por %p54, %p55
      %p57 = scmp.ne.s32.totalorder %s49, %s51
      %p58 = scmp.eq.s32.totalorder %s20, 1
      %p59 = por %p57, %p58
      %p60 = scmp.ne.s32.totalorder %s51, %s52
      %p61 = scmp.eq.s32.totalorder %s20, 0
      %p62 = por %p60, %p61
      %p63 = scmp.ne.s32.totalorder %s51, %s52
      %p64 = scmp.eq.s32.totalorder %s21, 1
      %p65 = por %p63, %p64
      %p67 = scmp.ne.s32.totalorder %s52, %s66
      %p68 = scmp.eq.s32.totalorder %s21, 0
      %p69 = por %p67, %p68
      %s70 = ssub.s32 %s15, %s22
      %p71 = scmp.eq.s32.totalorder %s70, 0
      %s73 = sadd.s32 %s72, 1
      %s74 = scalar_select %p71, %s72, %s73
      %p77 = pneg %p71
      %p78 = scmp.eq.s32.totalorder %s15, 1
      %p79 = por %p77, %p78
      %p80 = scmp.ne.s32.totalorder %s72, %s75
      %p81 = scmp.eq.s32.totalorder %s15, 0
      %p82 = por %p80, %p81
      %p83 = scmp.ne.s32.totalorder %s72, %s75
      %p84 = scmp.eq.s32.totalorder %s20, 1
      %p85 = por %p83, %p84
      %p86 = scmp.ne.s32.totalorder %s75, %s76
      %p87 = scmp.eq.s32.totalorder %s20, 0
      %p88 = por %p86, %p87
      %p89 = scmp.ne.s32.totalorder %s75, %s76
      %p90 = scmp.eq.s32.totalorder %s21, 1
      %p91 = por %p89, %p90
      %p93 = scmp.ne.s32.totalorder %s76, %s92
      %p94 = scmp.eq.s32.totalorder %s21, 0
      %p95 = por %p93, %p94
      %p96 = scmp.le.s32.totalorder 1, %s15
      %p97 = scmp.lt.s32.totalorder %s15, 3
      %p98 = pnand %p96, %p97
      %p99 = pneg %p98
      // Predicated region
      $region9: #{tpu_custom_call.1} parent=5 // pred_check
        _
      $region10: #{tpu_custom_call.1} parent=5 // pred_check_branch
        %101 = sbr.rel (%p98) target = $region12
      $region11: #{tpu_custom_call.1} parent=5 // pred_region
        %s102 = ssub.s32 %s15, 1
        // Predicated region
        $region13: #{tpu_custom_call.1} parent=11 // pred_check
          %p103 = pneg %p62
        $region14: #{tpu_custom_call.1} parent=11 // pred_check_branch
          %105 = sbr.rel (%p103) target = $region16
        $region15: #{tpu_custom_call.1} parent=11 // pred_region
          %107 = vsyncadd [#allocation6], 0
          %s108 = sshll.u32 %s1, 4
          %s109 = int_to_ptr.hbm [resolvable:$true] %s108
          %s110 = sshll.u32 [#allocation5], 4
          %s111 = int_to_ptr.vmem [resolvable:$true] %s110
          %116 = dma.hbm_to_vmem [thread:$0]  %s109, 1408, %s111, [#allocation6], 128, 128, 8
        $region16: #{tpu_custom_call.1} parent=11 // pred_fallthru
          _
      $region12: #{tpu_custom_call.1} parent=5 // pred_fallthru
        _
      %p117 = scmp.lt.s32.totalorder %s15, 2
      // Predicated region
      $region17: #{tpu_custom_call.1} parent=5 // pred_check
        %p118 = pneg %p117
      $region18: #{tpu_custom_call.1} parent=5 // pred_check_branch
        %120 = sbr.rel (%p118) target = $region20
      $region19: #{tpu_custom_call.1} parent=5 // pred_region
        // Predicated region
        $region21: #{tpu_custom_call.1} parent=19 // pred_check
          %p121 = pneg %p35
        $region22: #{tpu_custom_call.1} parent=19 // pred_check_branch
          %123 = sbr.rel (%p121) target = $region24
        $region23: #{tpu_custom_call.1} parent=19 // pred_region
          %s124 = sand.u32 %s25, 1
          %s125 = scalar_lea.sflag [#allocation3], %s124
          %s126 = sand.u32 %s25, 1
          %s127 = smul.addr %s126, 16
          %s128 = scalar_lea.vmem [#allocation2], %s127
          %s129 = smul.u32 4, %s15
          %131 = vsyncadd %s125, 0
          %s132 = smul.addr %s129, 4
          %s133 = scalar_lea.hbm %s0, %s132
          %s135 = sshll.u32 %s133, 4
          %s136 = int_to_ptr.hbm [resolvable:$true] %s135
          %s137 = sshll.u32 %s128, 4
          %s138 = int_to_ptr.vmem [resolvable:$true] %s137
          %140 = dma.hbm_to_vmem [thread:$0]  %s136, 256, %s138, %s125
        $region24: #{tpu_custom_call.1} parent=19 // pred_fallthru
          _
      $region20: #{tpu_custom_call.1} parent=5 // pred_fallthru
        _
      %p141 = scmp.le.s32.totalorder 1, %s15
      %p142 = scmp.lt.s32.totalorder %s15, 3
      %p143 = pnand %p141, %p142
      %p144 = pneg %p143
      // Predicated region
      $region25: #{tpu_custom_call.1} parent=5 // pred_check
        _
      $region26: #{tpu_custom_call.1} parent=5 // pred_check_branch
        %146 = sbr.rel (%p143) target = $region28
      $region27: #{tpu_custom_call.1} parent=5 // pred_region
        %s147 = ssub.s32 %s15, 1
        %s148 = sand.u32 %s28, 1
        %s149 = scalar_lea.sflag [#allocation3], %s148
        %s150 = sand.u32 %s28, 1
        %s151 = smul.addr %s150, 16
        %s152 = scalar_lea.vmem [#allocation2], %s151
        // Predicated region
        $region29: #{tpu_custom_call.1} parent=27 // pred_check
          %p153 = pneg %p41
        $region30: #{tpu_custom_call.1} parent=27 // pred_check_branch
          %155 = sbr.rel (%p153) target = $region32
        $region31: #{tpu_custom_call.1} parent=27 // pred_region
          %157 = dma.done %s149, 256
        $region32: #{tpu_custom_call.1} parent=27 // pred_fallthru
          _
        // Predicated region
        $region33: #{tpu_custom_call.1} parent=27 // pred_check
          %p158 = pneg %p62
        $region34: #{tpu_custom_call.1} parent=27 // pred_check_branch
          %160 = sbr.rel (%p158) target = $region36
        $region35: #{tpu_custom_call.1} parent=27 // pred_region
          %162 = dma.done [#allocation6], 1408
        $region36: #{tpu_custom_call.1} parent=27 // pred_fallthru
          _
        %s163 = sand.u32 %s28, 1
        %s164 = scalar_lea.sflag [#allocation3], %s163
        %s165 = sand.u32 %s28, 1
        %s166 = smul.addr %s165, 16
        %s167 = scalar_lea.vmem [#allocation2], %s166
        %p168 = pneg %p41
        %p169 = pneg %p38
        %p170 = pneg %p62
        %p171 = pneg %p59
        %p172 = pneg %p88
        %p173 = pneg %p85
        %s174 = sand.u32 %s75, 1
        %s175 = scalar_lea.sflag [#allocation4], %s174
        %s176 = sand.u32 %s75, 1
        %s177 = smul.addr %s176, 4
        %s178 = scalar_lea.vmem [#allocation7], %s177
        %s179 = smul.u32 4, %s20
        %s180 = smul.u32 4, %s20
        %v181 = vld [vmem:[#allocation5] sm:$0xff]
        %v182 = vld [vmem:[#allocation5 + $0x8] sm:$0xff]
        %v183 = vld [vmem:[#allocation5 + $0x10] sm:$0xff]
        %v184 = vld [vmem:[#allocation5 + $0x18] sm:$0xff]
        %v185 = vld [vmem:[#allocation5 + $0x20] sm:$0xff]
        %v186 = vld [vmem:[#allocation5 + $0x28] sm:$0xff]
        %v187 = vld [vmem:[#allocation5 + $0x30] sm:$0xff]
        %v188 = vld [vmem:[#allocation5 + $0x38] sm:$0xff]
        %v189 = vld [vmem:[#allocation5 + $0x40] sm:$0x3f]
        %v190 = vld [vmem:[#allocation5 + $0x48] sm:$0xff]
        %v191 = vld [vmem:[#allocation5 + $0x50] sm:$0x1]
        %v192 = vld [vmem:[%s152] sm:$0xff]
        %v193 = vld [vmem:[%s152 + $0x8] sm:$0xff]
        %195 = vset.pattern.permute.xlu0 4
        %196 = vperm.xlu0 %195, %v181
        %v197 = vpop.permute.xlu0 %196
        %200 = vset.pattern.permute.xlu0 4
        %201 = vperm.xlu0 %200, %v182
        %v202 = vpop.permute.xlu0 %201
        %205 = vset.pattern.permute.xlu0 4
        %206 = vperm.xlu0 %205, %v183
        %v207 = vpop.permute.xlu0 %206
        %210 = vset.pattern.permute.xlu0 4
        %211 = vperm.xlu0 %210, %v184
        %v212 = vpop.permute.xlu0 %211
        %215 = vset.pattern.permute.xlu0 4
        %216 = vperm.xlu0 %215, %v185
        %v217 = vpop.permute.xlu0 %216
        %221 = vst [vmem:[#allocation1] ss:$2 sm:$0xff] %v192
        %s222 = scalar_lea.vmem [#allocation1], 16
        %223 = vst [vmem:[%s222] ss:$2 sm:$0xff] %v193
        %v224 = vld.sshfl [vmem:[#allocation1] sm:$0xff pattern:$0x75316420]
        %v225 = vld.sshfl [vmem:[#allocation1 + $0x8] sm:$0xff pattern:$0x75316420]
        %v226 = vld.sshfl [vmem:[#allocation1 + $0x10] sm:$0xff pattern:$0x75316420]
        %v227 = vld.sshfl [vmem:[#allocation1 + $0x18] sm:$0xff pattern:$0x75316420]
        %vm228 = vcmask 31744
        %v229 = vsel %vm228, %v181, 0
        %v231 = vsel %vm228, %v182, 0
        %v233 = vsel %vm228, %v183, 0
        %v235 = vsel %vm228, %v184, 0
        %v237 = vsel %vm228, %v185, 0
        %vm239 = vcmask 1043456
        %v240 = vsel %vm239, %v224, 0
        %v242 = vsel %vm239, %v225, 0
        %v244 = vsel %vm239, %v226, 0
        %v246 = vsel %vm239, %v227, 0
        %248 = vmatpush.msra.mxu0 0.0
        %249 = vmatpush.msra.mxu0 0.0
        %250 = vmatpush.msra.mxu0 0.0
        %251 = vmatpush.msra.mxu0 0.0
        %252 = vmatpush.msra.mxu0 0.0
        %253 = vmatpush.msra.mxu0 0.0
        %254 = vmatpush.msra.mxu0 0.0
        %255 = vmatpush.msra.mxu0 0.0
        %256 = vmatpush.msra.mxu0 0.0
        %257 = vmatpush.msra.mxu0 0.0
        %258 = vmatpush.msra.mxu0 0.0
        %259 = vmatpush.msra.mxu0 0.0
        %260 = vmatpush.msra.mxu0 0.0
        %261 = vmatpush.msra.mxu0 0.0
        %262 = vmatpush.msra.mxu0 0.0
        %263 = vmatpush.msra.mxu0 %v240
        %264 = vmatmul.f32.gmra.mxu0 %v229
        %v265 = vpop.f32.mrf.mxu0
        %v266 = vadd.f32 %v197, %v265
        %267 = vmatmul.f32.gmra.mxu0 %v231
        %v268 = vpop.f32.mrf.mxu0
        %v269 = vadd.f32 %v202, %v268
        %270 = vmatmul.f32.gmra.mxu0 %v233
        %v271 = vpop.f32.mrf.mxu0
        %v272 = vadd.f32 %v207, %v271
        %273 = vmatmul.f32.gmra.mxu0 %v235
        %v274 = vpop.f32.mrf.mxu0
        %v275 = vadd.f32 %v212, %v274
        %276 = vmatmul.f32.gmra.mxu0 %v237
        %v277 = vpop.f32.mrf.mxu0
        %v278 = vadd.f32 %v217, %v277
        %279 = vdwg.mxu0
        %280 = vmatpush.msra.mxu0 0.0
        %281 = vmatpush.msra.mxu0 0.0
        %282 = vmatpush.msra.mxu0 0.0
        %283 = vmatpush.msra.mxu0 0.0
        %284 = vmatpush.msra.mxu0 0.0
        %285 = vmatpush.msra.mxu0 0.0
        %286 = vmatpush.msra.mxu0 0.0
        %287 = vmatpush.msra.mxu0 0.0
        %288 = vmatpush.msra.mxu0 0.0
        %289 = vmatpush.msra.mxu0 0.0
        %290 = vmatpush.msra.mxu0 0.0
        %291 = vmatpush.msra.mxu0 0.0
        %292 = vmatpush.msra.mxu0 0.0
        %293 = vmatpush.msra.mxu0 0.0
        %294 = vmatpush.msra.mxu0 0.0
        %295 = vmatpush.msra.mxu0 %v242
        %296 = vmatmul.f32.gmra.mxu0 %v229
        %v297 = vpop.f32.mrf.mxu0
        %v298 = vadd.f32 %v197, %v297
        %299 = vmatmul.f32.gmra.mxu0 %v231
        %v300 = vpop.f32.mrf.mxu0
        %v301 = vadd.f32 %v202, %v300
        %302 = vmatmul.f32.gmra.mxu0 %v233
        %v303 = vpop.f32.mrf.mxu0
        %v304 = vadd.f32 %v207, %v303
        %305 = vmatmul.f32.gmra.mxu0 %v235
        %v306 = vpop.f32.mrf.mxu0
        %v307 = vadd.f32 %v212, %v306
        %308 = vmatmul.f32.gmra.mxu0 %v237
        %v309 = vpop.f32.mrf.mxu0
        %v310 = vadd.f32 %v217, %v309
        %311 = vdwg.mxu0
        %312 = vmatpush.msra.mxu0 0.0
        %313 = vmatpush.msra.mxu0 0.0
        %314 = vmatpush.msra.mxu0 0.0
        %315 = vmatpush.msra.mxu0 0.0
        %316 = vmatpush.msra.mxu0 0.0
        %317 = vmatpush.msra.mxu0 0.0
        %318 = vmatpush.msra.mxu0 0.0
        %319 = vmatpush.msra.mxu0 0.0
        %320 = vmatpush.msra.mxu0 0.0
        %321 = vmatpush.msra.mxu0 0.0
        %322 = vmatpush.msra.mxu0 0.0
        %323 = vmatpush.msra.mxu0 0.0
        %324 = vmatpush.msra.mxu0 0.0
        %325 = vmatpush.msra.mxu0 0.0
        %326 = vmatpush.msra.mxu0 0.0
        %327 = vmatpush.msra.mxu0 %v244
        %328 = vmatmul.f32.gmra.mxu0 %v229
        %v329 = vpop.f32.mrf.mxu0
        %v330 = vadd.f32 %v197, %v329
        %331 = vmatmul.f32.gmra.mxu0 %v231
        %v332 = vpop.f32.mrf.mxu0
        %v333 = vadd.f32 %v202, %v332
        %334 = vmatmul.f32.gmra.mxu0 %v233
        %v335 = vpop.f32.mrf.mxu0
        %v336 = vadd.f32 %v207, %v335
        %337 = vmatmul.f32.gmra.mxu0 %v235
        %v338 = vpop.f32.mrf.mxu0
        %v339 = vadd.f32 %v212, %v338
        %340 = vmatmul.f32.gmra.mxu0 %v237
        %v341 = vpop.f32.mrf.mxu0
        %v342 = vadd.f32 %v217, %v341
        %343 = vdwg.mxu0
        %344 = vmatpush.msra.mxu0 0.0
        %345 = vmatpush.msra.mxu0 0.0
        %346 = vmatpush.msra.mxu0 0.0
        %347 = vmatpush.msra.mxu0 0.0
        %348 = vmatpush.msra.mxu0 0.0
        %349 = vmatpush.msra.mxu0 0.0
        %350 = vmatpush.msra.mxu0 0.0
        %351 = vmatpush.msra.mxu0 0.0
        %352 = vmatpush.msra.mxu0 0.0
        %353 = vmatpush.msra.mxu0 0.0
        %354 = vmatpush.msra.mxu0 0.0
        %355 = vmatpush.msra.mxu0 0.0
        %356 = vmatpush.msra.mxu0 0.0
        %357 = vmatpush.msra.mxu0 0.0
        %358 = vmatpush.msra.mxu0 0.0
        %359 = vmatpush.msra.mxu0 %v246
        %360 = vmatmul.f32.gmra.mxu0 %v229
        %v361 = vpop.f32.mrf.mxu0
        %v362 = vadd.f32 %v197, %v361
        %363 = vmatmul.f32.gmra.mxu0 %v231
        %v364 = vpop.f32.mrf.mxu0
        %v365 = vadd.f32 %v202, %v364
        %366 = vmatmul.f32.gmra.mxu0 %v233
        %v367 = vpop.f32.mrf.mxu0
        %v368 = vadd.f32 %v207, %v367
        %369 = vmatmul.f32.gmra.mxu0 %v235
        %v370 = vpop.f32.mrf.mxu0
        %v371 = vadd.f32 %v212, %v370
        %372 = vmatmul.f32.gmra.mxu0 %v237
        %v373 = vpop.f32.mrf.mxu0
        %v374 = vadd.f32 %v217, %v373
        %375 = vdwg.mxu0
        %vm376 = vcmp.gt.f32.partialorder %v266, 0.0
        %vm377 = vcmp.gt.f32.partialorder %v298, 0.0
        %vm378 = vcmp.gt.f32.partialorder %v330, 0.0
        %vm379 = vcmp.gt.f32.partialorder %v362, 0.0
        %vm380 = vcmp.gt.f32.partialorder %v269, 0.0
        %vm381 = vcmp.gt.f32.partialorder %v301, 0.0
        %vm382 = vcmp.gt.f32.partialorder %v333, 0.0
        %vm383 = vcmp.gt.f32.partialorder %v365, 0.0
        %vm384 = vcmp.gt.f32.partialorder %v272, 0.0
        %vm385 = vcmp.gt.f32.partialorder %v304, 0.0
        %vm386 = vcmp.gt.f32.partialorder %v336, 0.0
        %vm387 = vcmp.gt.f32.partialorder %v368, 0.0
        %vm388 = vcmp.gt.f32.partialorder %v275, 0.0
        %vm389 = vcmp.gt.f32.partialorder %v307, 0.0
        %vm390 = vcmp.gt.f32.partialorder %v339, 0.0
        %vm391 = vcmp.gt.f32.partialorder %v371, 0.0
        %vm392 = vcmp.gt.f32.partialorder %v278, 0.0
        %vm393 = vcmp.gt.f32.partialorder %v310, 0.0
        %vm394 = vcmp.gt.f32.partialorder %v342, 0.0
        %vm395 = vcmp.gt.f32.partialorder %v374, 0.0
        %v396 = vmul.f32 %v266, 0.01
        %v397 = vmul.f32 %v298, 0.01
        %v398 = vmul.f32 %v330, 0.01
        %v399 = vmul.f32 %v362, 0.01
        %v400 = vmul.f32 %v269, 0.01
        %v401 = vmul.f32 %v301, 0.01
        %v402 = vmul.f32 %v333, 0.01
        %v403 = vmul.f32 %v365, 0.01
        %v404 = vmul.f32 %v272, 0.01
        %v405 = vmul.f32 %v304, 0.01
        %v406 = vmul.f32 %v336, 0.01
        %v407 = vmul.f32 %v368, 0.01
        %v408 = vmul.f32 %v275, 0.01
        %v409 = vmul.f32 %v307, 0.01
        %v410 = vmul.f32 %v339, 0.01
        %v411 = vmul.f32 %v371, 0.01
        %v412 = vmul.f32 %v278, 0.01
        %v413 = vmul.f32 %v310, 0.01
        %v414 = vmul.f32 %v342, 0.01
        %v415 = vmul.f32 %v374, 0.01
        %v416 = vsel %vm376, %v266, %v396
        %v417 = vsel %vm377, %v298, %v397
        %v418 = vsel %vm378, %v330, %v398
        %v419 = vsel %vm379, %v362, %v399
        %v420 = vsel %vm380, %v269, %v400
        %v421 = vsel %vm381, %v301, %v401
        %v422 = vsel %vm382, %v333, %v402
        %v423 = vsel %vm383, %v365, %v403
        %v424 = vsel %vm384, %v272, %v404
        %v425 = vsel %vm385, %v304, %v405
        %v426 = vsel %vm386, %v336, %v406
        %v427 = vsel %vm387, %v368, %v407
        %v428 = vsel %vm388, %v275, %v408
        %v429 = vsel %vm389, %v307, %v409
        %v430 = vsel %vm390, %v339, %v410
        %v431 = vsel %vm391, %v371, %v411
        %v432 = vsel %vm392, %v278, %v412
        %v433 = vsel %vm393, %v310, %v413
        %v434 = vsel %vm394, %v342, %v414
        %v435 = vsel %vm395, %v374, %v415
        %437 = vset.pattern.permute.xlu0 40
        %438 = vperm.xlu0 %437, %v186
        %v439 = vpop.permute.xlu0 %438
        %442 = vset.pattern.permute.xlu0 40
        %443 = vperm.xlu0 %442, %v187
        %v444 = vpop.permute.xlu0 %443
        %447 = vset.pattern.permute.xlu0 40
        %448 = vperm.xlu0 %447, %v188
        %v449 = vpop.permute.xlu0 %448
        %452 = vset.pattern.permute.xlu0 40
        %453 = vperm.xlu0 %452, %v189
        %v454 = vpop.permute.xlu0 %453
        %vm456 = vcmask 326656
        %v457 = vsel %vm456, %v186, 0
        %v459 = vsel %vm456, %v187, 0
        %v461 = vsel %vm456, %v188, 0
        %v463 = vsel %vm456, %v189, 0
        %465 = vmatpush.msra.mxu0 0.0
        %466 = vmatpush.msra.mxu0 0.0
        %467 = vmatpush.msra.mxu0 0.0
        %468 = vmatpush.msra.mxu0 0.0
        %469 = vmatpush.msra.mxu0 0.0
        %470 = vmatpush.msra.mxu0 0.0
        %471 = vmatpush.msra.mxu0 0.0
        %472 = vmatpush.msra.mxu0 0.0
        %473 = vmatpush.msra.mxu0 0.0
        %474 = vmatpush.msra.mxu0 0.0
        %475 = vmatpush.msra.mxu0 0.0
        %476 = vmatpush.msra.mxu0 %v432
        %477 = vmatpush.msra.mxu0 %v428
        %478 = vmatpush.msra.mxu0 %v424
        %479 = vmatpush.msra.mxu0 %v420
        %480 = vmatpush.msra.mxu0 %v416
        %481 = vmatmul.f32.gmra.mxu0 %v457
        %v482 = vpop.f32.mrf.mxu0
        %v483 = vadd.f32 %v439, %v482
        %484 = vmatmul.f32.gmra.mxu0 %v459
        %v485 = vpop.f32.mrf.mxu0
        %v486 = vadd.f32 %v444, %v485
        %487 = vmatmul.f32.gmra.mxu0 %v461
        %v488 = vpop.f32.mrf.mxu0
        %v489 = vadd.f32 %v449, %v488
        %490 = vmatmul.f32.gmra.mxu0 %v463
        %v491 = vpop.f32.mrf.mxu0
        %v492 = vadd.f32 %v454, %v491
        %493 = vdwg.mxu0
        %494 = vmatpush.msra.mxu0 0.0
        %495 = vmatpush.msra.mxu0 0.0
        %496 = vmatpush.msra.mxu0 0.0
        %497 = vmatpush.msra.mxu0 0.0
        %498 = vmatpush.msra.mxu0 0.0
        %499 = vmatpush.msra.mxu0 0.0
        %500 = vmatpush.msra.mxu0 0.0
        %501 = vmatpush.msra.mxu0 0.0
        %502 = vmatpush.msra.mxu0 0.0
        %503 = vmatpush.msra.mxu0 0.0
        %504 = vmatpush.msra.mxu0 0.0
        %505 = vmatpush.msra.mxu0 %v433
        %506 = vmatpush.msra.mxu0 %v429
        %507 = vmatpush.msra.mxu0 %v425
        %508 = vmatpush.msra.mxu0 %v421
        %509 = vmatpush.msra.mxu0 %v417
        %510 = vmatmul.f32.gmra.mxu0 %v457
        %v511 = vpop.f32.mrf.mxu0
        %v512 = vadd.f32 %v439, %v511
        %513 = vmatmul.f32.gmra.mxu0 %v459
        %v514 = vpop.f32.mrf.mxu0
        %v515 = vadd.f32 %v444, %v514
        %516 = vmatmul.f32.gmra.mxu0 %v461
        %v517 = vpop.f32.mrf.mxu0
        %v518 = vadd.f32 %v449, %v517
        %519 = vmatmul.f32.gmra.mxu0 %v463
        %v520 = vpop.f32.mrf.mxu0
        %v521 = vadd.f32 %v454, %v520
        %522 = vdwg.mxu0
        %523 = vmatpush.msra.mxu0 0.0
        %524 = vmatpush.msra.mxu0 0.0
        %525 = vmatpush.msra.mxu0 0.0
        %526 = vmatpush.msra.mxu0 0.0
        %527 = vmatpush.msra.mxu0 0.0
        %528 = vmatpush.msra.mxu0 0.0
        %529 = vmatpush.msra.mxu0 0.0
        %530 = vmatpush.msra.mxu0 0.0
        %531 = vmatpush.msra.mxu0 0.0
        %532 = vmatpush.msra.mxu0 0.0
        %533 = vmatpush.msra.mxu0 0.0
        %534 = vmatpush.msra.mxu0 %v434
        %535 = vmatpush.msra.mxu0 %v430
        %536 = vmatpush.msra.mxu0 %v426
        %537 = vmatpush.msra.mxu0 %v422
        %538 = vmatpush.msra.mxu0 %v418
        %539 = vmatmul.f32.gmra.mxu0 %v457
        %v540 = vpop.f32.mrf.mxu0
        %v541 = vadd.f32 %v439, %v540
        %542 = vmatmul.f32.gmra.mxu0 %v459
        %v543 = vpop.f32.mrf.mxu0
        %v544 = vadd.f32 %v444, %v543
        %545 = vmatmul.f32.gmra.mxu0 %v461
        %v546 = vpop.f32.mrf.mxu0
        %v547 = vadd.f32 %v449, %v546
        %548 = vmatmul.f32.gmra.mxu0 %v463
        %v549 = vpop.f32.mrf.mxu0
        %v550 = vadd.f32 %v454, %v549
        %551 = vdwg.mxu0
        %552 = vmatpush.msra.mxu0 0.0
        %553 = vmatpush.msra.mxu0 0.0
        %554 = vmatpush.msra.mxu0 0.0
        %555 = vmatpush.msra.mxu0 0.0
        %556 = vmatpush.msra.mxu0 0.0
        %557 = vmatpush.msra.mxu0 0.0
        %558 = vmatpush.msra.mxu0 0.0
        %559 = vmatpush.msra.mxu0 0.0
        %560 = vmatpush.msra.mxu0 0.0
        %561 = vmatpush.msra.mxu0 0.0
        %562 = vmatpush.msra.mxu0 0.0
        %563 = vmatpush.msra.mxu0 %v435
        %564 = vmatpush.msra.mxu0 %v431
        %565 = vmatpush.msra.mxu0 %v427
        %566 = vmatpush.msra.mxu0 %v423
        %567 = vmatpush.msra.mxu0 %v419
        %568 = vmatmul.f32.gmra.mxu0 %v457
        %v569 = vpop.f32.mrf.mxu0
        %v570 = vadd.f32 %v439, %v569
        %571 = vmatmul.f32.gmra.mxu0 %v459
        %v572 = vpop.f32.mrf.mxu0
        %v573 = vadd.f32 %v444, %v572
        %574 = vmatmul.f32.gmra.mxu0 %v461
        %v575 = vpop.f32.mrf.mxu0
        %v576 = vadd.f32 %v449, %v575
        %577 = vmatmul.f32.gmra.mxu0 %v463
        %v578 = vpop.f32.mrf.mxu0
        %v579 = vadd.f32 %v454, %v578
        %580 = vdwg.mxu0
        %vm581 = vcmp.gt.f32.partialorder %v483, 0.0
        %vm582 = vcmp.gt.f32.partialorder %v512, 0.0
        %vm583 = vcmp.gt.f32.partialorder %v541, 0.0
        %vm584 = vcmp.gt.f32.partialorder %v570, 0.0
        %vm585 = vcmp.gt.f32.partialorder %v486, 0.0
        %vm586 = vcmp.gt.f32.partialorder %v515, 0.0
        %vm587 = vcmp.gt.f32.partialorder %v544, 0.0
        %vm588 = vcmp.gt.f32.partialorder %v573, 0.0
        %vm589 = vcmp.gt.f32.partialorder %v489, 0.0
        %vm590 = vcmp.gt.f32.partialorder %v518, 0.0
        %vm591 = vcmp.gt.f32.partialorder %v547, 0.0
        %vm592 = vcmp.gt.f32.partialorder %v576, 0.0
        %vm593 = vcmp.gt.f32.partialorder %v492, 0.0
        %vm594 = vcmp.gt.f32.partialorder %v521, 0.0
        %vm595 = vcmp.gt.f32.partialorder %v550, 0.0
        %vm596 = vcmp.gt.f32.partialorder %v579, 0.0
        %v597 = vmul.f32 %v483, 0.01
        %v598 = vmul.f32 %v512, 0.01
        %v599 = vmul.f32 %v541, 0.01
        %v600 = vmul.f32 %v570, 0.01
        %v601 = vmul.f32 %v486, 0.01
        %v602 = vmul.f32 %v515, 0.01
        %v603 = vmul.f32 %v544, 0.01
        %v604 = vmul.f32 %v573, 0.01
        %v605 = vmul.f32 %v489, 0.01
        %v606 = vmul.f32 %v518, 0.01
        %v607 = vmul.f32 %v547, 0.01
        %v608 = vmul.f32 %v576, 0.01
        %v609 = vmul.f32 %v492, 0.01
        %v610 = vmul.f32 %v521, 0.01
        %v611 = vmul.f32 %v550, 0.01
        %v612 = vmul.f32 %v579, 0.01
        %v613 = vsel %vm581, %v483, %v597
        %v614 = vsel %vm582, %v512, %v598
        %v615 = vsel %vm583, %v541, %v599
        %v616 = vsel %vm584, %v570, %v600
        %v617 = vsel %vm585, %v486, %v601
        %v618 = vsel %vm586, %v515, %v602
        %v619 = vsel %vm587, %v544, %v603
        %v620 = vsel %vm588, %v573, %v604
        %v621 = vsel %vm589, %v489, %v605
        %v622 = vsel %vm590, %v518, %v606
        %v623 = vsel %vm591, %v547, %v607
        %v624 = vsel %vm592, %v576, %v608
        %v625 = vsel %vm593, %v492, %v609
        %v626 = vsel %vm594, %v521, %v610
        %v627 = vsel %vm595, %v550, %v611
        %v628 = vsel %vm596, %v579, %v612
        %630 = vset.pattern.permute.xlu0 30
        %631 = vperm.xlu0 %630, %v190
        %v632 = vpop.permute.xlu0 %631
        %vm634 = vcmask 244736
        %v635 = vsel %vm634, %v190, 0
        %vm637 = vcmask 1045504
        %v639 = vsel %vm637, %v625, 0
        %v642 = vsel %vm637, %v626, 0
        %v645 = vsel %vm637, %v627, 0
        %v648 = vsel %vm637, %v628, 0
        %650 = vmatpush.msra.mxu0 0.0
        %651 = vmatpush.msra.mxu0 0.0
        %652 = vmatpush.msra.mxu0 0.0
        %653 = vmatpush.msra.mxu0 0.0
        %654 = vmatpush.msra.mxu0 0.0
        %655 = vmatpush.msra.mxu0 0.0
        %656 = vmatpush.msra.mxu0 0.0
        %657 = vmatpush.msra.mxu0 0.0
        %658 = vmatpush.msra.mxu0 0.0
        %659 = vmatpush.msra.mxu0 0.0
        %660 = vmatpush.msra.mxu0 0.0
        %661 = vmatpush.msra.mxu0 0.0
        %662 = vmatpush.msra.mxu0 %v639
        %663 = vmatpush.msra.mxu0 %v621
        %664 = vmatpush.msra.mxu0 %v617
        %665 = vmatpush.msra.mxu0 %v613
        %666 = vmatmul.f32.gmra.mxu0 %v635
        %v667 = vpop.f32.mrf.mxu0
        %v668 = vadd.f32 %v632, %v667
        %669 = vdwg.mxu0
        %670 = vmatpush.msra.mxu0 0.0
        %671 = vmatpush.msra.mxu0 0.0
        %672 = vmatpush.msra.mxu0 0.0
        %673 = vmatpush.msra.mxu0 0.0
        %674 = vmatpush.msra.mxu0 0.0
        %675 = vmatpush.msra.mxu0 0.0
        %676 = vmatpush.msra.mxu0 0.0
        %677 = vmatpush.msra.mxu0 0.0
        %678 = vmatpush.msra.mxu0 0.0
        %679 = vmatpush.msra.mxu0 0.0
        %680 = vmatpush.msra.mxu0 0.0
        %681 = vmatpush.msra.mxu0 0.0
        %682 = vmatpush.msra.mxu0 %v642
        %683 = vmatpush.msra.mxu0 %v622
        %684 = vmatpush.msra.mxu0 %v618
        %685 = vmatpush.msra.mxu0 %v614
        %686 = vmatmul.f32.gmra.mxu0 %v635
        %v687 = vpop.f32.mrf.mxu0
        %v688 = vadd.f32 %v632, %v687
        %689 = vdwg.mxu0
        %690 = vmatpush.msra.mxu0 0.0
        %691 = vmatpush.msra.mxu0 0.0
        %692 = vmatpush.msra.mxu0 0.0
        %693 = vmatpush.msra.mxu0 0.0
        %694 = vmatpush.msra.mxu0 0.0
        %695 = vmatpush.msra.mxu0 0.0
        %696 = vmatpush.msra.mxu0 0.0
        %697 = vmatpush.msra.mxu0 0.0
        %698 = vmatpush.msra.mxu0 0.0
        %699 = vmatpush.msra.mxu0 0.0
        %700 = vmatpush.msra.mxu0 0.0
        %701 = vmatpush.msra.mxu0 0.0
        %702 = vmatpush.msra.mxu0 %v645
        %703 = vmatpush.msra.mxu0 %v623
        %704 = vmatpush.msra.mxu0 %v619
        %705 = vmatpush.msra.mxu0 %v615
        %706 = vmatmul.f32.gmra.mxu0 %v635
        %v707 = vpop.f32.mrf.mxu0
        %v708 = vadd.f32 %v632, %v707
        %709 = vdwg.mxu0
        %710 = vmatpush.msra.mxu0 0.0
        %711 = vmatpush.msra.mxu0 0.0
        %712 = vmatpush.msra.mxu0 0.0
        %713 = vmatpush.msra.mxu0 0.0
        %714 = vmatpush.msra.mxu0 0.0
        %715 = vmatpush.msra.mxu0 0.0
        %716 = vmatpush.msra.mxu0 0.0
        %717 = vmatpush.msra.mxu0 0.0
        %718 = vmatpush.msra.mxu0 0.0
        %719 = vmatpush.msra.mxu0 0.0
        %720 = vmatpush.msra.mxu0 0.0
        %721 = vmatpush.msra.mxu0 0.0
        %722 = vmatpush.msra.mxu0 %v648
        %723 = vmatpush.msra.mxu0 %v624
        %724 = vmatpush.msra.mxu0 %v620
        %725 = vmatpush.msra.mxu0 %v616
        %726 = vmatmul.f32.gmra.mxu0 %v635
        %v727 = vpop.f32.mrf.mxu0
        %v728 = vadd.f32 %v632, %v727
        %729 = vdwg.mxu0
        %vm730 = vcmp.gt.f32.partialorder %v668, 0.0
        %vm731 = vcmp.gt.f32.partialorder %v688, 0.0
        %vm732 = vcmp.gt.f32.partialorder %v708, 0.0
        %vm733 = vcmp.gt.f32.partialorder %v728, 0.0
        %v734 = vmul.f32 %v668, 0.01
        %v735 = vmul.f32 %v688, 0.01
        %v736 = vmul.f32 %v708, 0.01
        %v737 = vmul.f32 %v728, 0.01
        %v738 = vsel %vm730, %v668, %v734
        %v739 = vsel %vm731, %v688, %v735
        %v740 = vsel %vm732, %v708, %v736
        %v741 = vsel %vm733, %v728, %v737
        %743 = vset.pattern.permute.xlu0 8
        %744 = vperm.xlu0 %743, %v191
        %v745 = vpop.permute.xlu0 %744
        %vm747 = vcmask 64512
        %v748 = vsel %vm747, %v191, 0
        %750 = vmatpush.msra.mxu0 0.0
        %751 = vmatpush.msra.mxu0 0.0
        %752 = vmatpush.msra.mxu0 0.0
        %753 = vmatpush.msra.mxu0 0.0
        %754 = vmatpush.msra.mxu0 0.0
        %755 = vmatpush.msra.mxu0 0.0
        %756 = vmatpush.msra.mxu0 0.0
        %757 = vmatpush.msra.mxu0 0.0
        %758 = vmatpush.msra.mxu0 0.0
        %759 = vmatpush.msra.mxu0 0.0
        %760 = vmatpush.msra.mxu0 0.0
        %761 = vmatpush.msra.mxu0 0.0
        %762 = vmatpush.msra.mxu0 0.0
        %763 = vmatpush.msra.mxu0 0.0
        %764 = vmatpush.msra.mxu0 0.0
        %765 = vmatpush.msra.mxu0 %v738
        %766 = vmatmul.f32.gmra.mxu0 %v748
        %v767 = vpop.f32.mrf.mxu0
        %v768 = vadd.f32 %v745, %v767
        %769 = vdwg.mxu0
        %770 = vmatpush.msra.mxu0 0.0
        %771 = vmatpush.msra.mxu0 0.0
        %772 = vmatpush.msra.mxu0 0.0
        %773 = vmatpush.msra.mxu0 0.0
        %774 = vmatpush.msra.mxu0 0.0
        %775 = vmatpush.msra.mxu0 0.0
        %776 = vmatpush.msra.mxu0 0.0
        %777 = vmatpush.msra.mxu0 0.0
        %778 = vmatpush.msra.mxu0 0.0
        %779 = vmatpush.msra.mxu0 0.0
        %780 = vmatpush.msra.mxu0 0.0
        %781 = vmatpush.msra.mxu0 0.0
        %782 = vmatpush.msra.mxu0 0.0
        %783 = vmatpush.msra.mxu0 0.0
        %784 = vmatpush.msra.mxu0 0.0
        %785 = vmatpush.msra.mxu0 %v739
        %786 = vmatmul.f32.gmra.mxu0 %v748
        %v787 = vpop.f32.mrf.mxu0
        %v788 = vadd.f32 %v745, %v787
        %789 = vdwg.mxu0
        %790 = vmatpush.msra.mxu0 0.0
        %791 = vmatpush.msra.mxu0 0.0
        %792 = vmatpush.msra.mxu0 0.0
        %793 = vmatpush.msra.mxu0 0.0
        %794 = vmatpush.msra.mxu0 0.0
        %795 = vmatpush.msra.mxu0 0.0
        %796 = vmatpush.msra.mxu0 0.0
        %797 = vmatpush.msra.mxu0 0.0
        %798 = vmatpush.msra.mxu0 0.0
        %799 = vmatpush.msra.mxu0 0.0
        %800 = vmatpush.msra.mxu0 0.0
        %801 = vmatpush.msra.mxu0 0.0
        %802 = vmatpush.msra.mxu0 0.0
        %803 = vmatpush.msra.mxu0 0.0
        %804 = vmatpush.msra.mxu0 0.0
        %805 = vmatpush.msra.mxu0 %v740
        %806 = vmatmul.f32.gmra.mxu0 %v748
        %v807 = vpop.f32.mrf.mxu0
        %v808 = vadd.f32 %v745, %v807
        %809 = vdwg.mxu0
        %810 = vmatpush.msra.mxu0 0.0
        %811 = vmatpush.msra.mxu0 0.0
        %812 = vmatpush.msra.mxu0 0.0
        %813 = vmatpush.msra.mxu0 0.0
        %814 = vmatpush.msra.mxu0 0.0
        %815 = vmatpush.msra.mxu0 0.0
        %816 = vmatpush.msra.mxu0 0.0
        %817 = vmatpush.msra.mxu0 0.0
        %818 = vmatpush.msra.mxu0 0.0
        %819 = vmatpush.msra.mxu0 0.0
        %820 = vmatpush.msra.mxu0 0.0
        %821 = vmatpush.msra.mxu0 0.0
        %822 = vmatpush.msra.mxu0 0.0
        %823 = vmatpush.msra.mxu0 0.0
        %824 = vmatpush.msra.mxu0 0.0
        %825 = vmatpush.msra.mxu0 %v741
        %826 = vmatmul.f32.gmra.mxu0 %v748
        %v827 = vpop.f32.mrf.mxu0
        %v828 = vadd.f32 %v745, %v827
        %829 = vdwg.mxu0
        %v834 = vrot.slane %v788, 7
        %v835 = vrot.slane %v808, 6
        %v836 = vrot.slane %v828, 5
        %vm837 = vcmask 1040384
        %v838 = vsel %vm837, %v768, %v834
        %vm839 = vcmask 1042434
        %v840 = vsel %vm839, %v835, %v836
        %vm841 = vcmask 1041408
        %v842 = vsel %vm841, %v838, %v840
        %v844 = vlaneseq
        %vm845 = vcmp.ge.s32.totalorder %v844, 0
        %vm846 = vcmp.lt.s32.totalorder %v844, 512
        %vm847 = vmand %vm845, %vm846
        %848 = vst.msk [vmem:[%s178] sm:$0xf] %vm847, %v842
        %s849 = sand.u32 %s75, 1
        %s850 = scalar_lea.sflag [#allocation4], %s849
        %s851 = sand.u32 %s75, 1
        %s852 = smul.addr %s851, 4
        %s853 = scalar_lea.vmem [#allocation7], %s852
        // Predicated region
        $region37: #{tpu_custom_call.1} parent=27 // pred_check
          %p854 = pneg %p85
        $region38: #{tpu_custom_call.1} parent=27 // pred_check_branch
          %856 = sbr.rel (%p854) target = $region40
        $region39: #{tpu_custom_call.1} parent=27 // pred_region
          %s857 = smul.u32 4, %s20
          %859 = vsyncadd %s850, 0
          %s860 = scalar_lea.hbm %s2, %s857
          %s862 = sshll.u32 %s853, 4
          %s863 = int_to_ptr.vmem [resolvable:$true] %s862
          %s864 = sshll.u32 %s860, 4
          %s865 = int_to_ptr.hbm [resolvable:$true] %s864
          %867 = dma.vmem_to_hbm [thread:$0]  %s863, 64, %s865, %s850
        $region40: #{tpu_custom_call.1} parent=27 // pred_fallthru
          _
      $region28: #{tpu_custom_call.1} parent=5 // pred_fallthru
        _
      %p868 = scmp.le.s32.totalorder 2, %s15
      // Predicated region
      $region41: #{tpu_custom_call.1} parent=5 // pred_check
        %p869 = pneg %p868
      $region42: #{tpu_custom_call.1} parent=5 // pred_check_branch
        %871 = sbr.rel (%p869) target = $region44
      $region43: #{tpu_custom_call.1} parent=5 // pred_region
        %s872 = ssub.s32 %s15, 2
        // Predicated region
        $region45: #{tpu_custom_call.1} parent=43 // pred_check
          %p873 = pneg %p91
        $region46: #{tpu_custom_call.1} parent=43 // pred_check_branch
          %875 = sbr.rel (%p873) target = $region48
        $region47: #{tpu_custom_call.1} parent=43 // pred_region
          %s876 = sand.u32 %s76, 1
          %s877 = scalar_lea.sflag [#allocation4], %s876
          %s878 = sand.u32 %s76, 1
          %s879 = smul.addr %s878, 4
          %s880 = scalar_lea.vmem [#allocation7], %s879
          %882 = dma.done %s877, 64
        $region48: #{tpu_custom_call.1} parent=43 // pred_fallthru
          _
      $region44: #{tpu_custom_call.1} parent=5 // pred_fallthru
        _
    $region6: #{tpu_custom_call.1} parent=1 // loop_footer
      %s19 = sadd.s32 1, %s15
    $region7: #{tpu_custom_call.1} parent=1 // loop_footer_branch
      %14 = sbr.rel target = $region3
    $region8: #{tpu_custom_call.1} parent=1 // loop_exit
      _
    %883 = vsyncpa [#allocation3], 1
    %s884 = scalar_lea.sflag [#allocation3], 1
    %885 = vsyncpa %s884, 1
    %886 = vsyncpa [#allocation6], 1
    %887 = vsyncpa [#allocation4], 1
    %s888 = scalar_lea.sflag [#allocation4], 1
    %889 = vsyncpa %s888, 1

</llo_original>
